<compile_context>
chip_gen: v5e
topology: v5e:2x2
jax: 0.10.0
libtpu: 0.0.40
codegen_flags: <defaults>
</compile_context>

<pallas_src>
import functools

import jax
import jax.numpy as jnp
import numpy as np
from jax.experimental import pallas as pl
from jax.experimental.pallas import tpu as pltpu


def _mha_kernel(x_ref, wq_ref, wk_ref, wv_ref, bq_ref, bk_ref, bv_ref,
                wlin_ref, blin_ref, o_ref, *, n_seq, bblk):
    h = pl.program_id(1)
    rows, cp = x_ref.shape

    # x is fetched once per batch block (its block index is constant over the
    # head axis); the in-kernel bf16 cast is a cheap VPU pass.
    x2d = x_ref[...].astype(jnp.bfloat16)                        # (rows, Cp)

    # Per-head Q/K/V projections: big-M bf16 MXU matmuls, f32 accumulation.
    # The 1/sqrt(d_model) score scale is pre-folded into wq/bq.
    q = jnp.dot(x2d, wq_ref[0], preferred_element_type=jnp.float32) + bq_ref[0]
    k = jnp.dot(x2d, wk_ref[0], preferred_element_type=jnp.float32) + bk_ref[0]
    v = jnp.dot(x2d, wv_ref[0], preferred_element_type=jnp.float32) + bv_ref[0]

    # One hoisted bf16 cast each; the (rows, Cp) -> (bblk, N, Cp) reshape is
    # tile-aligned because N % 8 == 0 and Cp % 128 == 0.
    q_b = q.reshape(bblk, n_seq, cp).astype(jnp.bfloat16)
    k_b = k.reshape(bblk, n_seq, cp).astype(jnp.bfloat16)
    v_b = v.reshape(bblk, n_seq, cp).astype(jnp.bfloat16)

    # Scores for the whole batch block: batched MXU matmul contracting the
    # last dims (no transpose / XLU relayout).
    s = jnp.einsum('bqc,bkc->bqk', q_b, k_b,
                   preferred_element_type=jnp.float32)           # (bblk, N, N)

    # Softmax in f32 with deferred normalization: scale the (N, Cp) head
    # output instead of the (N, N) probabilities; reciprocal runs on the
    # otherwise-idle EUP slot.
    m = jnp.max(s, axis=-1, keepdims=True)
    p = jnp.exp(s - m)
    denom = jnp.sum(p, axis=-1, keepdims=True)                   # (bblk, N, 1)

    head_out = jnp.einsum('bqk,bkc->bqc', p.astype(jnp.bfloat16), v_b,
                          preferred_element_type=jnp.float32)    # (bblk, N, Cp)
    head_out = head_out * pl.reciprocal(denom, approx=True)

    # Fused concat + output Linear: one big-M matmul per head, accumulated
    # directly into the resident f32 output block.
    contrib = jnp.dot(head_out.reshape(rows, cp).astype(jnp.bfloat16),
                      wlin_ref[0], preferred_element_type=jnp.float32)

    @pl.when(h == 0)
    def _():
        o_ref[...] = jnp.broadcast_to(blin_ref[...], o_ref.shape)

    o_ref[...] += contrib


def _pad_last(a, target):
    pad = target - a.shape[-1]
    if pad == 0:
        return a
    cfg = [(0, 0)] * (a.ndim - 1) + [(0, pad)]
    return jnp.pad(a, cfg)


def _pad_last2(a, target):
    return _pad_last(
        jnp.pad(a, [(0, 0)] * (a.ndim - 2)
                + [(0, target - a.shape[-2]), (0, 0)]), target)


def _derive_batch_block(B, N, Cp, budget_bytes):
    """Largest bblk (dividing B) whose per-block live set fits `budget_bytes`.

    Rough per-batch live set: x f32 double-buffered (8*N*Cp) + output f32
    double-buffered (8*N*Cp) + q/k/v f32 (12*N*Cp) + q/k/v bf16 (6*N*Cp) +
    head_out f32 (4*N*Cp) + scores/probs f32 (8*N*N).
    """
    per_batch = 38 * N * Cp + 8 * N * N
    fixed = 4 * 2 * 2 * Cp * Cp + 8 * Cp * 8     # bf16 weight slabs (x2 buf) + biases
    bblk = max(1, min(B, int(max(0, budget_bytes - fixed) // per_batch)))
    if B >= 2:
        # Keep >= 2 blocks along the "parallel" batch axis so v7x's second
        # TensorCore gets work.
        bblk = min(bblk, B // 2)
    bblk = max(1, bblk)
    while B % bblk:
        bblk -= 1
    return bblk


def multihead_attention(x, wq_t, wk_t, wv_t, bq, bk, bv, wlin_t, blin,
                        *, batch_block=None,
                        vmem_budget_bytes=32 * 1024 * 1024,
                        vmem_limit_bytes=64 * 1024 * 1024):
    """x: (B, N, C); wq_t/wk_t/wv_t/wlin_t: (H, C, C) (already transposed so
    the kernel computes x @ W^T directly); bq/bk/bv: (H, 1, C); blin: (1, C).
    Returns (B, N, C) float32.

    vmem_budget_bytes / vmem_limit_bytes default to values safe on v7x
    (64 MiB VMEM per TensorCore); raise them on v5e/v6e (128 MiB) to grow the
    batch block further.
    """
    B, N, C = x.shape
    H = wq_t.shape[0]
    assert N % 8 == 0, "sequence length must be a multiple of 8"
    # TODO(synk): pad + mask the sequence axis to support arbitrary N.

    # Lane-dense feature dim (unmasked vst on the output path).
    Cp = max(128, ((C + 127) // 128) * 128)

    if batch_block is None:
        batch_block = _derive_batch_block(B, N, Cp, vmem_budget_bytes)
    bblk = batch_block
    assert B % bblk == 0
    rows_blk = bblk * N
    grid = (B // bblk, H)          # heads innermost (reduction / "arbitrary")

    scale = 1.0 / (C ** 0.5)       # folded into Wq / bq (uses the REAL C)

    # x stays f32 (fetched once per batch block; cast to bf16 in-kernel).
    x2d = _pad_last(x.reshape(B * N, C), Cp).astype(jnp.float32)
    wq_bf = _pad_last2(wq_t * scale, Cp).astype(jnp.bfloat16)
    wk_bf = _pad_last2(wk_t, Cp).astype(jnp.bfloat16)
    wv_bf = _pad_last2(wv_t, Cp).astype(jnp.bfloat16)
    wl_bf = _pad_last2(wlin_t, Cp).astype(jnp.bfloat16)
    bq_f = _pad_last(bq * scale, Cp).astype(jnp.float32)
    bk_f = _pad_last(bk, Cp).astype(jnp.float32)
    bv_f = _pad_last(bv, Cp).astype(jnp.float32)
    blin_f = _pad_last(blin, Cp).astype(jnp.float32)

    kernel = functools.partial(_mha_kernel, n_seq=N, bblk=bblk)

    out2d = pl.pallas_call(
        kernel,
        out_shape=jax.ShapeDtypeStruct((B * N, Cp), jnp.float32),
        grid_spec=pltpu.PrefetchScalarGridSpec(
            num_scalar_prefetch=0,
            grid=grid,
            in_specs=[
                pl.BlockSpec((rows_blk, Cp), lambda b, h: (b, 0)),    # x rows
                pl.BlockSpec((1, Cp, Cp), lambda b, h: (h, 0, 0)),    # Wq^T (scaled)
                pl.BlockSpec((1, Cp, Cp), lambda b, h: (h, 0, 0)),    # Wk^T
                pl.BlockSpec((1, Cp, Cp), lambda b, h: (h, 0, 0)),    # Wv^T
                pl.BlockSpec((1, 1, Cp), lambda b, h: (h, 0, 0)),     # b_q (scaled)
                pl.BlockSpec((1, 1, Cp), lambda b, h: (h, 0, 0)),     # b_k
                pl.BlockSpec((1, 1, Cp), lambda b, h: (h, 0, 0)),     # b_v
                pl.BlockSpec((1, Cp, Cp), lambda b, h: (h, 0, 0)),    # W_lin^T
                pl.BlockSpec((1, Cp), lambda b, h: (0, 0)),           # b_lin
            ],
            out_specs=pl.BlockSpec((rows_blk, Cp), lambda b, h: (b, 0)),
        ),
        compiler_params=pltpu.CompilerParams(
            dimension_semantics=("parallel", "arbitrary"),
            vmem_limit_bytes=vmem_limit_bytes),
    )(x2d, wq_bf, wk_bf, wv_bf, bq_f, bk_f, bv_f, wl_bf, blin_f)

    return out2d[:, :C].reshape(B, N, C)


def reference(x, wq_t, wk_t, wv_t, bq, bk, bv, wlin_t, blin):
    """Pure-JAX f32 mirror of the PyTorch forward, on bf16-rounded operands
    (mirrors the kernel's weight/input casts) for a fair comparison."""
    B, N, C = x.shape
    H = wq_t.shape[0]
    scale = 1.0 / (C ** 0.5)
    rnd = lambda a: a.astype(jnp.bfloat16).astype(jnp.float32)
    xr = rnd(x)
    out = jnp.broadcast_to(blin.reshape(1, 1, C), (B, N, C)).astype(jnp.float32)
    for h in range(H):
        q = xr @ rnd(wq_t[h] * scale) + bq[h] * scale
        k = xr @ rnd(wk_t[h]) + bk[h]
        v = xr @ rnd(wv_t[h]) + bv[h]
        s = jnp.einsum('bnc,bmc->bnm', q, k)
        p = jax.nn.softmax(s, axis=-1)
        out = out + jnp.einsum('bnm,bmc->bnc', p, v) @ rnd(wlin_t[h])
    return out


if __name__ == "__main__":
    B, N, d_model, num_heads = 2, 8, 32, 4
    C, H = d_model, num_heads

    key = jax.random.PRNGKey(0)
    kx, kw1, kb1, kw2, kb2 = jax.random.split(key, 5)

    x = jax.random.normal(kx, (B, N, C), dtype=jnp.float32)

    # Per-head qkv Linear: torch weight (3C, C), bias (3C,).
    wqkv = 0.05 * jax.random.normal(kw1, (H, 3 * C, C), dtype=jnp.float32)
    bqkv = 0.05 * jax.random.normal(kb1, (H, 3 * C), dtype=jnp.float32)
    # Split the fused weight into three per-head slabs, stored transposed so
    # the kernel computes x @ W_slice^T directly.
    wq_t = jnp.transpose(wqkv[:, 0 * C:1 * C, :], (0, 2, 1))   # (H, C, C)
    wk_t = jnp.transpose(wqkv[:, 1 * C:2 * C, :], (0, 2, 1))
    wv_t = jnp.transpose(wqkv[:, 2 * C:3 * C, :], (0, 2, 1))
    bq = bqkv[:, 0 * C:1 * C].reshape(H, 1, C)
    bk = bqkv[:, 1 * C:2 * C].reshape(H, 1, C)
    bv = bqkv[:, 2 * C:3 * C].reshape(H, 1, C)

    # Output Linear: torch weight (C, H*C), bias (C,). Split per head, transposed.
    wlin = 0.05 * jax.random.normal(kw2, (C, H * C), dtype=jnp.float32)
    blin = 0.05 * jax.random.normal(kb2, (C,), dtype=jnp.float32)
    wlin_t = jnp.transpose(wlin.reshape(C, H, C), (1, 2, 0))   # (H, C, C)
    blin_r = blin.reshape(1, C)

    out = multihead_attention(x, wq_t, wk_t, wv_t, bq, bk, bv, wlin_t, blin_r)
    out = jax.block_until_ready(out)

    ref = reference(x, wq_t, wk_t, wv_t, bq, bk, bv, wlin_t, blin_r)
    np.testing.assert_allclose(np.asarray(out), np.asarray(ref),
                               rtol=2e-2, atol=2e-2)
    print("KERNEL_OK")
</pallas_src>

<mosaic_0001>
module attributes {stable_mosaic.version = 11 : i64} {
  func.func @_mha_kernel(%arg0: i32, %arg1: i32, %arg2: memref<8x128xf32, #tpu.memory_space<vmem>>, %arg3: memref<1x128x128xbf16, #tpu.memory_space<vmem>>, %arg4: memref<1x128x128xbf16, #tpu.memory_space<vmem>>, %arg5: memref<1x128x128xbf16, #tpu.memory_space<vmem>>, %arg6: memref<1x1x128xf32, #tpu.memory_space<vmem>>, %arg7: memref<1x1x128xf32, #tpu.memory_space<vmem>>, %arg8: memref<1x1x128xf32, #tpu.memory_space<vmem>>, %arg9: memref<1x128x128xbf16, #tpu.memory_space<vmem>>, %arg10: memref<1x128xf32, #tpu.memory_space<vmem>>, %arg11: memref<8x128xf32, #tpu.memory_space<vmem>>) attributes {dimension_semantics = [#tpu.dimension_semantics<parallel>, #tpu.dimension_semantics<arbitrary>], iteration_bounds = array<i64: 2, 4>, scalar_prefetch = 0 : i64, scratch_operands = 0 : i64, tpu.core_type = #tpu.core_type<tc>, window_params = [{transform_indices = @transform_0, window_bounds = array<i64: 8, 128>}, {transform_indices = @transform_1, window_bounds = array<i64: 1, 128, 128>}, {transform_indices = @transform_2, window_bounds = array<i64: 1, 128, 128>}, {transform_indices = @transform_3, window_bounds = array<i64: 1, 128, 128>}, {transform_indices = @transform_4, window_bounds = array<i64: 1, 1, 128>}, {transform_indices = @transform_5, window_bounds = array<i64: 1, 1, 128>}, {transform_indices = @transform_6, window_bounds = array<i64: 1, 1, 128>}, {transform_indices = @transform_7, window_bounds = array<i64: 1, 128, 128>}, {pipeline_mode = #tpu.pipeline_mode<synchronous>, transform_indices = @transform_8, window_bounds = array<i64: 1, 128>}, {transform_indices = @transform_9, window_bounds = array<i64: 8, 128>}]} {
    %c0 = arith.constant 0 : index
    %c0_0 = arith.constant 0 : index
    %0 = vector.load %arg2[%c0, %c0_0] : memref<8x128xf32, #tpu.memory_space<vmem>>, vector<8x128xf32>
    %1 = arith.truncf %0 : vector<8x128xf32> to vector<8x128xbf16>
    %c0_1 = arith.constant 0 : index
    %c0_2 = arith.constant 0 : index
    %c0_3 = arith.constant 0 : index
    %2 = vector.load %arg3[%c0_1, %c0_2, %c0_3] : memref<1x128x128xbf16, #tpu.memory_space<vmem>>, vector<1x128x128xbf16>
    %3 = vector.shape_cast %2 : vector<1x128x128xbf16> to vector<128x128xbf16>
    %cst = arith.constant dense<0.000000e+00> : vector<8x128xf32>
    %4 = tpu.matmul %1, %3, %cst {dimension_numbers = #tpu.dot_dimension_numbers<[1], [0], [0], [1], [0, 0, 1, 1], [], []>} : vector<8x128xbf16>, vector<128x128xbf16>, vector<8x128xf32> -> vector<8x128xf32>
    %c0_4 = arith.constant 0 : index
    %c0_5 = arith.constant 0 : index
    %c0_6 = arith.constant 0 : index
    %5 = vector.load %arg6[%c0_4, %c0_5, %c0_6] : memref<1x1x128xf32, #tpu.memory_space<vmem>>, vector<1x1x128xf32>
    %6 = vector.shape_cast %5 : vector<1x1x128xf32> to vector<1x128xf32>
    %7 = vector.broadcast %6 : vector<1x128xf32> to vector<8x128xf32>
    %8 = arith.addf %4, %7 : vector<8x128xf32>
    %c0_7 = arith.constant 0 : index
    %c0_8 = arith.constant 0 : index
    %c0_9 = arith.constant 0 : index
    %9 = vector.load %arg4[%c0_7, %c0_8, %c0_9] : memref<1x128x128xbf16, #tpu.memory_space<vmem>>, vector<1x128x128xbf16>
    %10 = vector.shape_cast %9 : vector<1x128x128xbf16> to vector<128x128xbf16>
    %cst_10 = arith.constant dense<0.000000e+00> : vector<8x128xf32>
    %11 = tpu.matmul %1, %10, %cst_10 {dimension_numbers = #tpu.dot_dimension_numbers<[1], [0], [0], [1], [0, 0, 1, 1], [], []>} : vector<8x128xbf16>, vector<128x128xbf16>, vector<8x128xf32> -> vector<8x128xf32>
    %c0_11 = arith.constant 0 : index
    %c0_12 = arith.constant 0 : index
    %c0_13 = arith.constant 0 : index
    %12 = vector.load %arg7[%c0_11, %c0_12, %c0_13] : memref<1x1x128xf32, #tpu.memory_space<vmem>>, vector<1x1x128xf32>
    %13 = vector.shape_cast %12 : vector<1x1x128xf32> to vector<1x128xf32>
    %14 = vector.broadcast %13 : vector<1x128xf32> to vector<8x128xf32>
    %15 = arith.addf %11, %14 : vector<8x128xf32>
    %c0_14 = arith.constant 0 : index
    %c0_15 = arith.constant 0 : index
    %c0_16 = arith.constant 0 : index
    %16 = vector.load %arg5[%c0_14, %c0_15, %c0_16] : memref<1x128x128xbf16, #tpu.memory_space<vmem>>, vector<1x128x128xbf16>
    %17 = vector.shape_cast %16 : vector<1x128x128xbf16> to vector<128x128xbf16>
    %cst_17 = arith.constant dense<0.000000e+00> : vector<8x128xf32>
    %18 = tpu.matmul %1, %17, %cst_17 {dimension_numbers = #tpu.dot_dimension_numbers<[1], [0], [0], [1], [0, 0, 1, 1], [], []>} : vector<8x128xbf16>, vector<128x128xbf16>, vector<8x128xf32> -> vector<8x128xf32>
    %c0_18 = arith.constant 0 : index
    %c0_19 = arith.constant 0 : index
    %c0_20 = arith.constant 0 : index
    %19 = vector.load %arg8[%c0_18, %c0_19, %c0_20] : memref<1x1x128xf32, #tpu.memory_space<vmem>>, vector<1x1x128xf32>
    %20 = vector.shape_cast %19 : vector<1x1x128xf32> to vector<1x128xf32>
    %21 = vector.broadcast %20 : vector<1x128xf32> to vector<8x128xf32>
    %22 = arith.addf %18, %21 : vector<8x128xf32>
    %23 = vector.shape_cast %8 : vector<8x128xf32> to vector<1x8x128xf32>
    %24 = arith.truncf %23 : vector<1x8x128xf32> to vector<1x8x128xbf16>
    %25 = vector.shape_cast %15 : vector<8x128xf32> to vector<1x8x128xf32>
    %26 = arith.truncf %25 : vector<1x8x128xf32> to vector<1x8x128xbf16>
    %27 = vector.shape_cast %22 : vector<8x128xf32> to vector<1x8x128xf32>
    %28 = arith.truncf %27 : vector<1x8x128xf32> to vector<1x8x128xbf16>
    "tpu.trace_start"() <{level = 10 : i32, message = "bqc,bkc->bqk"}> : () -> ()
    %cst_21 = arith.constant dense<0.000000e+00> : vector<1x8x8xf32>
    %29 = tpu.matmul %24, %26, %cst_21 {dimension_numbers = #tpu.dot_dimension_numbers<[2], [2], [1], [1], [0, 0, 0, 1, 1, 1], [0], [0]>} : vector<1x8x128xbf16>, vector<1x8x128xbf16>, vector<1x8x8xf32> -> vector<1x8x8xf32>
    "tpu.trace_stop"() : () -> ()
    %cst_22 = arith.constant dense<0xFF800000> : vector<1x8xf32>
    %30 = vector.multi_reduction <maximumf>, %29, %cst_22 [2] : vector<1x8x8xf32> to vector<1x8xf32>
    %31 = vector.shape_cast %30 : vector<1x8xf32> to vector<1x8x1xf32>
    %32 = vector.broadcast %31 : vector<1x8x1xf32> to vector<1x8x8xf32>
    %33 = arith.subf %29, %32 : vector<1x8x8xf32>
    %34 = math.exp %33 : vector<1x8x8xf32>
    %cst_23 = arith.constant dense<0.000000e+00> : vector<1x8xf32>
    %35 = vector.multi_reduction <add>, %34, %cst_23 [2] : vector<1x8x8xf32> to vector<1x8xf32>
    %36 = vector.shape_cast %35 : vector<1x8xf32> to vector<1x8x1xf32>
    %37 = arith.truncf %34 : vector<1x8x8xf32> to vector<1x8x8xbf16>
    "tpu.trace_start"() <{level = 10 : i32, message = "bqk,bkc->bqc"}> : () -> ()
    %cst_24 = arith.constant dense<0.000000e+00> : vector<1x8x128xf32>
    %38 = tpu.matmul %37, %28, %cst_24 {dimension_numbers = #tpu.dot_dimension_numbers<[2], [1], [1], [2], [0, 0, 0, 1, 1, 2], [0], [0]>} : vector<1x8x8xbf16>, vector<1x8x128xbf16>, vector<1x8x128xf32> -> vector<1x8x128xf32>
    "tpu.trace_stop"() : () -> ()
    %39 = tpu.reciprocal %36 {approx = true} : vector<1x8x1xf32> -> vector<1x8x1xf32>
    %40 = vector.broadcast %39 : vector<1x8x1xf32> to vector<1x8x128xf32>
    %41 = arith.mulf %38, %40 : vector<1x8x128xf32>
    %42 = vector.shape_cast %41 : vector<1x8x128xf32> to vector<8x128xf32>
    %43 = arith.truncf %42 : vector<8x128xf32> to vector<8x128xbf16>
    %c0_25 = arith.constant 0 : index
    %c0_26 = arith.constant 0 : index
    %c0_27 = arith.constant 0 : index
    %44 = vector.load %arg9[%c0_25, %c0_26, %c0_27] : memref<1x128x128xbf16, #tpu.memory_space<vmem>>, vector<1x128x128xbf16>
    %45 = vector.shape_cast %44 : vector<1x128x128xbf16> to vector<128x128xbf16>
    %cst_28 = arith.constant dense<0.000000e+00> : vector<8x128xf32>
    %46 = tpu.matmul %43, %45, %cst_28 {dimension_numbers = #tpu.dot_dimension_numbers<[1], [0], [0], [1], [0, 0, 1, 1], [], []>} : vector<8x128xbf16>, vector<128x128xbf16>, vector<8x128xf32> -> vector<8x128xf32>
    %c0_i32 = arith.constant 0 : i32
    %47 = arith.cmpi eq, %arg1, %c0_i32 : i32
    %48 = arith.extui %47 : i1 to i32
    %c0_i32_29 = arith.constant 0 : i32
    %49 = arith.cmpi ne, %48, %c0_i32_29 : i32
    scf.if %49 {
      %c0_34 = arith.constant 0 : index
      %c0_35 = arith.constant 0 : index
      %53 = vector.load %arg10[%c0_34, %c0_35] : memref<1x128xf32, #tpu.memory_space<vmem>>, vector<1x128xf32>
      %54 = vector.shape_cast %53 : vector<1x128xf32> to vector<1x128xf32>
      %55 = vector.broadcast %54 : vector<1x128xf32> to vector<8x128xf32>
      %c0_36 = arith.constant 0 : index
      %c0_37 = arith.constant 0 : index
      %56 = vector.load %arg11[%c0_36, %c0_37] : memref<8x128xf32, #tpu.memory_space<vmem>>, vector<8x128xf32>
      tpu.vector_store %arg11[%c0_36, %c0_37], %55 {strides = array<i32>} : memref<8x128xf32, #tpu.memory_space<vmem>>, vector<8x128xf32>,
    } else {
    }
    %c0_30 = arith.constant 0 : index
    %c0_31 = arith.constant 0 : index
    %50 = vector.load %arg11[%c0_30, %c0_31] : memref<8x128xf32, #tpu.memory_space<vmem>>, vector<8x128xf32>
    %51 = arith.addf %50, %46 : vector<8x128xf32>
    %c0_32 = arith.constant 0 : index
    %c0_33 = arith.constant 0 : index
    %52 = vector.load %arg11[%c0_32, %c0_33] : memref<8x128xf32, #tpu.memory_space<vmem>>, vector<8x128xf32>
    tpu.vector_store %arg11[%c0_32, %c0_33], %51 {strides = array<i32>} : memref<8x128xf32, #tpu.memory_space<vmem>>, vector<8x128xf32>,
    return
  }
  func.func @transform_0(%arg0: i32, %arg1: i32) -> (i32, i32) {
    %c0_i32 = arith.constant 0 : i32
    %c0_i32_0 = arith.constant 0 : i32
    return %arg0, %c0_i32 : i32, i32
  }
  func.func @transform_1(%arg0: i32, %arg1: i32) -> (i32, i32, i32) {
    %c0_i32 = arith.constant 0 : i32
    %c0_i32_0 = arith.constant 0 : i32
    %c0_i32_1 = arith.constant 0 : i32
    return %arg1, %c0_i32, %c0_i32_0 : i32, i32, i32
  }
  func.func @transform_2(%arg0: i32, %arg1: i32) -> (i32, i32, i32) {
    %c0_i32 = arith.constant 0 : i32
    %c0_i32_0 = arith.constant 0 : i32
    %c0_i32_1 = arith.constant 0 : i32
    return %arg1, %c0_i32, %c0_i32_0 : i32, i32, i32
  }
  func.func @transform_3(%arg0: i32, %arg1: i32) -> (i32, i32, i32) {
    %c0_i32 = arith.constant 0 : i32
    %c0_i32_0 = arith.constant 0 : i32
    %c0_i32_1 = arith.constant 0 : i32
    return %arg1, %c0_i32, %c0_i32_0 : i32, i32, i32
  }
  func.func @transform_4(%arg0: i32, %arg1: i32) -> (i32, i32, i32) {
    %c0_i32 = arith.constant 0 : i32
    %c0_i32_0 = arith.constant 0 : i32
    %c0_i32_1 = arith.constant 0 : i32
    return %arg1, %c0_i32, %c0_i32_0 : i32, i32, i32
  }
  func.func @transform_5(%arg0: i32, %arg1: i32) -> (i32, i32, i32) {
    %c0_i32 = arith.constant 0 : i32
    %c0_i32_0 = arith.constant 0 : i32
    %c0_i32_1 = arith.constant 0 : i32
    return %arg1, %c0_i32, %c0_i32_0 : i32, i32, i32
  }
  func.func @transform_6(%arg0: i32, %arg1: i32) -> (i32, i32, i32) {
    %c0_i32 = arith.constant 0 : i32
    %c0_i32_0 = arith.constant 0 : i32
    %c0_i32_1 = arith.constant 0 : i32
    return %arg1, %c0_i32, %c0_i32_0 : i32, i32, i32
  }
  func.func @transform_7(%arg0: i32, %arg1: i32) -> (i32, i32, i32) {
    %c0_i32 = arith.constant 0 : i32
    %c0_i32_0 = arith.constant 0 : i32
    %c0_i32_1 = arith.constant 0 : i32
    return %arg1, %c0_i32, %c0_i32_0 : i32, i32, i32
  }
  func.func @transform_8(%arg0: i32, %arg1: i32) -> (i32, i32) {
    %c0_i32 = arith.constant 0 : i32
    %c0_i32_0 = arith.constant 0 : i32
    %c0_i32_1 = arith.constant 0 : i32
    return %c0_i32, %c0_i32_0 : i32, i32
  }
  func.func @transform_9(%arg0: i32, %arg1: i32) -> (i32, i32) {
    %c0_i32 = arith.constant 0 : i32
    %c0_i32_0 = arith.constant 0 : i32
    return %arg0, %c0_i32 : i32, i32
  }
}

</mosaic_0001>

<llo_original>
// kernel: tpu_custom_call.1
$region0: #{tpu_custom_call.1}
  #allocation0 [shape = 'u32[]', space=smem, size = 0x4, offset = 0x4, fixed_abs, tag = 'smem constant byte address 0x4 - core index']
  #allocation1 [shape = 'u32[72,128]{1,0:T(1,128)}', space=vmem, size = 0x9000, scoped, tag = 'internal scratch']
  %s0 = inlined_call_operand.hbm [shape: f32[16,128], index: 0, kind: input, shape index: {}]
  %s1 = inlined_call_operand.hbm [shape: bf16[4,128,128], index: 1, kind: input, shape index: {}]
  %s2 = inlined_call_operand.hbm [shape: bf16[4,128,128], index: 2, kind: input, shape index: {}]
  %s3 = inlined_call_operand.hbm [shape: bf16[4,128,128], index: 3, kind: input, shape index: {}]
  %s4 = inlined_call_operand.hbm [shape: f32[4,1,128], index: 4, kind: input, shape index: {}]
  %s5 = inlined_call_operand.vmem [shape: f32[4,1,128], index: 5, kind: input, shape index: {}]
  %s6 = inlined_call_operand.hbm [shape: f32[4,1,128], index: 6, kind: input, shape index: {}]
  %s7 = inlined_call_operand.hbm [shape: bf16[4,128,128], index: 7, kind: input, shape index: {}]
  %s8 = inlined_call_operand.vmem [shape: f32[1,128], index: 8, kind: input, shape index: {}]
  %s9 = inlined_call_operand.hbm [shape: f32[16,128], index: 9, kind: output, shape index: {}]
  %s10 = sld [smem:[#allocation0]]
  $region101: #{tpu_custom_call.1} parent=0
    _
  %s12 = ssub.s32 1, %s10
  %s13 = scalar_select 0, %s12, %s10
  $region1: #{tpu_custom_call.1} parent=0
    #allocation2 [shape = 'u8[8192]{0}', space=vmem, size = 0x2000, scoped, tag = 'input window, operand 0']
    #allocation3 [shape = 's32[2]{0}', space=sflag, size = 0x8, scoped, tag = 'scoped memory for tpu_custom_call.1']
    #allocation4 [shape = 's32[2]{0}', space=sflag, size = 0x8, scoped, tag = 'scoped memory for tpu_custom_call.1']
    #allocation5 [shape = 'u8[65536]{0}', space=vmem, size = 0x10000, scoped, tag = 'input window, operand 1']
    #allocation6 [shape = 's32[2]{0}', space=sflag, size = 0x8, scoped, tag = 'scoped memory for tpu_custom_call.1']
    #allocation7 [shape = 'u8[65536]{0}', space=vmem, size = 0x10000, scoped, tag = 'input window, operand 2']
    #allocation8 [shape = 'u8[65536]{0}', space=vmem, size = 0x10000, scoped, tag = 'input window, operand 3']
    #allocation9 [shape = 's32[2]{0}', space=sflag, size = 0x8, scoped, tag = 'scoped memory for tpu_custom_call.1']
    #allocation10 [shape = 'u8[1024]{0}', space=vmem, size = 0x400, scoped, tag = 'input window, operand 4']
    #allocation11 [shape = 'u8[1024]{0}', space=vmem, size = 0x400, scoped, tag = 'input window, operand 6']
    #allocation12 [shape = 's32[2]{0}', space=sflag, size = 0x8, scoped, tag = 'scoped memory for tpu_custom_call.1']
    #allocation13 [shape = 'u8[65536]{0}', space=vmem, size = 0x10000, scoped, tag = 'input window, operand 7']
    #allocation14 [shape = 'u8[8192]{0}', space=vmem, size = 0x2000, scoped, tag = 'output window, operand 0']
    %14 = vsyncpa [#allocation3], 0
    %s15 = scalar_lea.sflag [#allocation3], 1
    %16 = vsyncpa %s15, 0
    %17 = vsyncpa [#allocation6], 0
    %s18 = scalar_lea.sflag [#allocation6], 1
    %19 = vsyncpa %s18, 0
    %20 = vsyncpa [#allocation9], 0
    %s21 = scalar_lea.sflag [#allocation9], 1
    %22 = vsyncpa %s21, 0
    %23 = vsyncpa [#allocation12], 0
    %s24 = scalar_lea.sflag [#allocation12], 1
    %25 = vsyncpa %s24, 0
    %26 = vsyncpa [#allocation4], 0
    %s27 = scalar_lea.sflag [#allocation4], 1
    %28 = vsyncpa %s27, 0
    loop: start=0, step=1, limit=10
    $region2: #{tpu_custom_call.1} parent=1 // loop_pre_header
      _
    $region3: #{tpu_custom_call.1} parent=1 // loop_header
      %s30 = sphi 0, %s34
      %p31 = scmp.ge.s32.totalorder %s30, 10
      %s37 = sphi 0, %s49
      %s38 = sphi 0, %s45
      %s39 = sphi 0, %s37
      %s40 = sphi 0, %s38
      %s41 = sphi 0, %s39
      %s42 = sphi 0, %s40
      %s52 = sphi 0, %s54
      %s55 = sphi 0, %s52
      %s56 = sphi 0, %s55
      %s72 = sphi 0, %s56
      %s78 = sphi 0, %s80
      %s81 = sphi 0, %s78
      %s82 = sphi 0, %s81
      %s98 = sphi 0, %s82
      %s104 = sphi 0, %s106
      %s107 = sphi 0, %s104
      %s108 = sphi 0, %s107
      %s124 = sphi 0, %s108
      %s130 = sphi 0, %s132
      %s133 = sphi 0, %s130
      %s134 = sphi 0, %s133
      %s150 = sphi 0, %s134
      %s156 = sphi 0, %s158
      %s159 = sphi 0, %s156
      %s160 = sphi 0, %s159
      %s176 = sphi 0, %s160
      %s182 = sphi 0, %s184
      %s185 = sphi 0, %s182
      %s186 = sphi 0, %s185
      %s202 = sphi 0, %s186
      %s208 = sphi 0, %s210
      %s211 = sphi 0, %s208
      %s212 = sphi 0, %s211
      %s228 = sphi 0, %s212
      %s234 = sphi 0, %s236
      %s237 = sphi 0, %s234
      %s238 = sphi 0, %s237
      %s254 = sphi 0, %s238
      %s258 = sphi 0, %s258
      %s260 = sphi 0, %s258
      %s261 = sphi 0, %s260
      %s275 = sphi 0, %s261
      %s281 = sphi 0, %s283
      %s284 = sphi 0, %s281
      %s285 = sphi 0, %s284
      %s301 = sphi 0, %s285
    $region4: #{tpu_custom_call.1} parent=1 // loop_header_branch
      %33 = sbr.rel (%p31) target = $region8
    $region5: #{tpu_custom_call.1} parent=1 // loop_body
      %s35 = ssub.s32 %s30, 1
      %s36 = ssub.s32 %s30, 2
      %s43 = sadd.s32 1, %s38
      %p44 = scmp.ge.s32.totalorder %s43, 4
      %s45 = scalar_select %p44, 0, %s43
      %s46 = sadd.s32 1, %s37
      %s47 = scalar_select %p44, %s46, %s37
      %p48 = scmp.ge.s32.totalorder %s47, 2
      %s49 = scalar_select %p48, 0, %s47
      %s50 = ssub.s32 %s37, %s49
      %p51 = scmp.eq.s32.totalorder %s50, 0
      %s53 = sadd.s32 %s52, 1
      %s54 = scalar_select %p51, %s52, %s53
      %p57 = pneg %p51
      %p58 = scmp.eq.s32.totalorder %s30, 7
      %p59 = por %p57, %p58
      %p60 = scmp.ne.s32.totalorder %s52, %s55
      %p61 = scmp.eq.s32.totalorder %s30, 0
      %p62 = por %p60, %p61
      %p63 = scmp.ne.s32.totalorder %s52, %s55
      %p64 = scmp.eq.s32.totalorder %s35, 7
      %p65 = por %p63, %p64
      %p66 = scmp.ne.s32.totalorder %s55, %s56
      %p67 = scmp.eq.s32.totalorder %s35, 0
      %p68 = por %p66, %p67
      %p69 = scmp.ne.s32.totalorder %s55, %s56
      %p70 = scmp.eq.s32.totalorder %s36, 7
      %p71 = por %p69, %p70
      %p73 = scmp.ne.s32.totalorder %s56, %s72
      %p74 = scmp.eq.s32.totalorder %s36, 0
      %p75 = por %p73, %p74
      %s76 = ssub.s32 %s38, %s45
      %p77 = scmp.eq.s32.totalorder %s76, 0
      %s79 = sadd.s32 %s78, 1
      %s80 = scalar_select %p77, %s78, %s79
      %p83 = pneg %p77
      %p84 = scmp.eq.s32.totalorder %s30, 7
      %p85 = por %p83, %p84
      %p86 = scmp.ne.s32.totalorder %s78, %s81
      %p87 = scmp.eq.s32.totalorder %s30, 0
      %p88 = por %p86, %p87
      %p89 = scmp.ne.s32.totalorder %s78, %s81
      %p90 = scmp.eq.s32.totalorder %s35, 7
      %p91 = por %p89, %p90
      %p92 = scmp.ne.s32.totalorder %s81, %s82
      %p93 = scmp.eq.s32.totalorder %s35, 0
      %p94 = por %p92, %p93
      %p95 = scmp.ne.s32.totalorder %s81, %s82
      %p96 = scmp.eq.s32.totalorder %s36, 7
      %p97 = por %p95, %p96
      %p99 = scmp.ne.s32.totalorder %s82, %s98
      %p100 = scmp.eq.s32.totalorder %s36, 0
      %p101 = por %p99, %p100
      %s102 = ssub.s32 %s38, %s45
      %p103 = scmp.eq.s32.totalorder %s102, 0
      %s105 = sadd.s32 %s104, 1
      %s106 = scalar_select %p103, %s104, %s105
      %p109 = pneg %p103
      %p110 = scmp.eq.s32.totalorder %s30, 7
      %p111 = por %p109, %p110
      %p112 = scmp.ne.s32.totalorder %s104, %s107
      %p113 = scmp.eq.s32.totalorder %s30, 0
      %p114 = por %p112, %p113
      %p115 = scmp.ne.s32.totalorder %s104, %s107
      %p116 = scmp.eq.s32.totalorder %s35, 7
      %p117 = por %p115, %p116
      %p118 = scmp.ne.s32.totalorder %s107, %s108
      %p119 = scmp.eq.s32.totalorder %s35, 0
      %p120 = por %p118, %p119
      %p121 = scmp.ne.s32.totalorder %s107, %s108
      %p122 = scmp.eq.s32.totalorder %s36, 7
      %p123 = por %p121, %p122
      %p125 = scmp.ne.s32.totalorder %s108, %s124
      %p126 = scmp.eq.s32.totalorder %s36, 0
      %p127 = por %p125, %p126
      %s128 = ssub.s32 %s38, %s45
      %p129 = scmp.eq.s32.totalorder %s128, 0
      %s131 = sadd.s32 %s130, 1
      %s132 = scalar_select %p129, %s130, %s131
      %p135 = pneg %p129
      %p136 = scmp.eq.s32.totalorder %s30, 7
      %p137 = por %p135, %p136
      %p138 = scmp.ne.s32.totalorder %s130, %s133
      %p139 = scmp.eq.s32.totalorder %s30, 0
      %p140 = por %p138, %p139
      %p141 = scmp.ne.s32.totalorder %s130, %s133
      %p142 = scmp.eq.s32.totalorder %s35, 7
      %p143 = por %p141, %p142
      %p144 = scmp.ne.s32.totalorder %s133, %s134
      %p145 = scmp.eq.s32.totalorder %s35, 0
      %p146 = por %p144, %p145
      %p147 = scmp.ne.s32.totalorder %s133, %s134
      %p148 = scmp.eq.s32.totalorder %s36, 7
      %p149 = por %p147, %p148
      %p151 = scmp.ne.s32.totalorder %s134, %s150
      %p152 = scmp.eq.s32.totalorder %s36, 0
      %p153 = por %p151, %p152
      %s154 = ssub.s32 %s38, %s45
      %p155 = scmp.eq.s32.totalorder %s154, 0
      %s157 = sadd.s32 %s156, 1
      %s158 = scalar_select %p155, %s156, %s157
      %p161 = pneg %p155
      %p162 = scmp.eq.s32.totalorder %s30, 7
      %p163 = por %p161, %p162
      %p164 = scmp.ne.s32.totalorder %s156, %s159
      %p165 = scmp.eq.s32.totalorder %s30, 0
      %p166 = por %p164, %p165
      %p167 = scmp.ne.s32.totalorder %s156, %s159
      %p168 = scmp.eq.s32.totalorder %s35, 7
      %p169 = por %p167, %p168
      %p170 = scmp.ne.s32.totalorder %s159, %s160
      %p171 = scmp.eq.s32.totalorder %s35, 0
      %p172 = por %p170, %p171
      %p173 = scmp.ne.s32.totalorder %s159, %s160
      %p174 = scmp.eq.s32.totalorder %s36, 7
      %p175 = por %p173, %p174
      %p177 = scmp.ne.s32.totalorder %s160, %s176
      %p178 = scmp.eq.s32.totalorder %s36, 0
      %p179 = por %p177, %p178
      %s180 = ssub.s32 %s38, %s45
      %p181 = scmp.eq.s32.totalorder %s180, 0
      %s183 = sadd.s32 %s182, 1
      %s184 = scalar_select %p181, %s182, %s183
      %p187 = pneg %p181
      %p188 = scmp.eq.s32.totalorder %s30, 7
      %p189 = por %p187, %p188
      %p190 = scmp.ne.s32.totalorder %s182, %s185
      %p191 = scmp.eq.s32.totalorder %s30, 0
      %p192 = por %p190, %p191
      %p193 = scmp.ne.s32.totalorder %s182, %s185
      %p194 = scmp.eq.s32.totalorder %s35, 7
      %p195 = por %p193, %p194
      %p196 = scmp.ne.s32.totalorder %s185, %s186
      %p197 = scmp.eq.s32.totalorder %s35, 0
      %p198 = por %p196, %p197
      %p199 = scmp.ne.s32.totalorder %s185, %s186
      %p200 = scmp.eq.s32.totalorder %s36, 7
      %p201 = por %p199, %p200
      %p203 = scmp.ne.s32.totalorder %s186, %s202
      %p204 = scmp.eq.s32.totalorder %s36, 0
      %p205 = por %p203, %p204
      %s206 = ssub.s32 %s38, %s45
      %p207 = scmp.eq.s32.totalorder %s206, 0
      %s209 = sadd.s32 %s208, 1
      %s210 = scalar_select %p207, %s208, %s209
      %p213 = pneg %p207
      %p214 = scmp.eq.s32.totalorder %s30, 7
      %p215 = por %p213, %p214
      %p216 = scmp.ne.s32.totalorder %s208, %s211
      %p217 = scmp.eq.s32.totalorder %s30, 0
      %p218 = por %p216, %p217
      %p219 = scmp.ne.s32.totalorder %s208, %s211
      %p220 = scmp.eq.s32.totalorder %s35, 7
      %p221 = por %p219, %p220
      %p222 = scmp.ne.s32.totalorder %s211, %s212
      %p223 = scmp.eq.s32.totalorder %s35, 0
      %p224 = por %p222, %p223
      %p225 = scmp.ne.s32.totalorder %s211, %s212
      %p226 = scmp.eq.s32.totalorder %s36, 7
      %p227 = por %p225, %p226
      %p229 = scmp.ne.s32.totalorder %s212, %s228
      %p230 = scmp.eq.s32.totalorder %s36, 0
      %p231 = por %p229, %p230
      %s232 = ssub.s32 %s38, %s45
      %p233 = scmp.eq.s32.totalorder %s232, 0
      %s235 = sadd.s32 %s234, 1
      %s236 = scalar_select %p233, %s234, %s235
      %p239 = pneg %p233
      %p240 = scmp.eq.s32.totalorder %s30, 7
      %p241 = por %p239, %p240
      %p242 = scmp.ne.s32.totalorder %s234, %s237
      %p243 = scmp.eq.s32.totalorder %s30, 0
      %p244 = por %p242, %p243
      %p245 = scmp.ne.s32.totalorder %s234, %s237
      %p246 = scmp.eq.s32.totalorder %s35, 7
      %p247 = por %p245, %p246
      %p248 = scmp.ne.s32.totalorder %s237, %s238
      %p249 = scmp.eq.s32.totalorder %s35, 0
      %p250 = por %p248, %p249
      %p251 = scmp.ne.s32.totalorder %s237, %s238
      %p252 = scmp.eq.s32.totalorder %s36, 7
      %p253 = por %p251, %p252
      %p255 = scmp.ne.s32.totalorder %s238, %s254
      %p256 = scmp.eq.s32.totalorder %s36, 0
      %p257 = por %p255, %p256
      %s259 = sadd.s32 %s258, 1
      %p262 = scmp.eq.s32.totalorder %s30, 7
      %p263 = scmp.ne.s32.totalorder %s258, %s260
      %p264 = scmp.eq.s32.totalorder %s30, 0
      %p265 = por %p263, %p264
      %p266 = scmp.ne.s32.totalorder %s258, %s260
      %p267 = scmp.eq.s32.totalorder %s35, 7
      %p268 = por %p266, %p267
      %p269 = scmp.ne.s32.totalorder %s260, %s261
      %p270 = scmp.eq.s32.totalorder %s35, 0
      %p271 = por %p269, %p270
      %p272 = scmp.ne.s32.totalorder %s260, %s261
      %p273 = scmp.eq.s32.totalorder %s36, 7
      %p274 = por %p272, %p273
      %p276 = scmp.ne.s32.totalorder %s261, %s275
      %p277 = scmp.eq.s32.totalorder %s36, 0
      %p278 = por %p276, %p277
      %s279 = ssub.s32 %s37, %s49
      %p280 = scmp.eq.s32.totalorder %s279, 0
      %s282 = sadd.s32 %s281, 1
      %s283 = scalar_select %p280, %s281, %s282
      %p286 = pneg %p280
      %p287 = scmp.eq.s32.totalorder %s30, 7
      %p288 = por %p286, %p287
      %p289 = scmp.ne.s32.totalorder %s281, %s284
      %p290 = scmp.eq.s32.totalorder %s30, 0
      %p291 = por %p289, %p290
      %p292 = scmp.ne.s32.totalorder %s281, %s284
      %p293 = scmp.eq.s32.totalorder %s35, 7
      %p294 = por %p292, %p293
      %p295 = scmp.ne.s32.totalorder %s284, %s285
      %p296 = scmp.eq.s32.totalorder %s35, 0
      %p297 = por %p295, %p296
      %p298 = scmp.ne.s32.totalorder %s284, %s285
      %p299 = scmp.eq.s32.totalorder %s36, 7
      %p300 = por %p298, %p299
      %p302 = scmp.ne.s32.totalorder %s285, %s301
      %p303 = scmp.eq.s32.totalorder %s36, 0
      %p304 = por %p302, %p303
      %p305 = scmp.le.s32.totalorder 1, %s30
      %p306 = scmp.lt.s32.totalorder %s30, 9
      %p307 = pnand %p305, %p306
      %p308 = pneg %p307
      // Predicated region
      $region9: #{tpu_custom_call.1} parent=5 // pred_check
        _
      $region10: #{tpu_custom_call.1} parent=5 // pred_check_branch
        %310 = sbr.rel (%p307) target = $region12
      $region11: #{tpu_custom_call.1} parent=5 // pred_region
        %s311 = ssub.s32 %s30, 1
        // Predicated region
        $region13: #{tpu_custom_call.1} parent=11 // pred_check
          %p312 = pneg %p271
        $region14: #{tpu_custom_call.1} parent=11 // pred_check_branch
          %314 = sbr.rel (%p312) target = $region16
        $region15: #{tpu_custom_call.1} parent=11 // pred_region
          _
        $region16: #{tpu_custom_call.1} parent=11 // pred_fallthru
          _
      $region12: #{tpu_custom_call.1} parent=5 // pred_fallthru
        _
      %p315 = scmp.lt.s32.totalorder %s30, 8
      // Predicated region
      $region17: #{tpu_custom_call.1} parent=5 // pred_check
        %p316 = pneg %p315
      $region18: #{tpu_custom_call.1} parent=5 // pred_check_branch
        %318 = sbr.rel (%p316) target = $region20
      $region19: #{tpu_custom_call.1} parent=5 // pred_region
        // Predicated region
        $region21: #{tpu_custom_call.1} parent=19 // pred_check
          %p319 = pneg %p62
        $region22: #{tpu_custom_call.1} parent=19 // pred_check_branch
          %321 = sbr.rel (%p319) target = $region24
        $region23: #{tpu_custom_call.1} parent=19 // pred_region
          %s322 = sand.u32 %s52, 1
          %s323 = scalar_lea.sflag [#allocation3], %s322
          %s324 = sand.u32 %s52, 1
          %s325 = smul.addr %s324, 8
          %s326 = scalar_lea.vmem [#allocation2], %s325
          %328 = vsyncadd %s323, 0
          %s329 = smul.addr %s37, 8
          %s330 = scalar_lea.hbm %s0, %s329
          %s332 = sshll.u32 %s330, 4
          %s333 = int_to_ptr.hbm [resolvable:$true] %s332
          %s334 = sshll.u32 %s326, 4
          %s335 = int_to_ptr.vmem [resolvable:$true] %s334
          %337 = dma.hbm_to_vmem [thread:$0]  %s333, 128, %s335, %s323
        $region24: #{tpu_custom_call.1} parent=19 // pred_fallthru
          _
        // Predicated region
        $region25: #{tpu_custom_call.1} parent=19 // pred_check
          %p338 = pneg %p88
        $region26: #{tpu_custom_call.1} parent=19 // pred_check_branch
          %340 = sbr.rel (%p338) target = $region28
        $region27: #{tpu_custom_call.1} parent=19 // pred_region
          %s341 = sand.u32 %s30, 1
          %s342 = scalar_lea.sflag [#allocation6], %s341
          %s343 = sand.u32 %s78, 1
          %s344 = smul.addr %s343, 64
          %s345 = scalar_lea.vmem [#allocation5], %s344
          %347 = vsyncadd %s342, 0
          %s348 = smul.addr %s38, 16
          %s349 = smul.addr %s348, 4
          %s350 = scalar_lea.hbm %s1, %s349
          %s351 = sshll.u32 %s350, 4
          %s352 = int_to_ptr.hbm [resolvable:$true] %s351
          %s353 = sshll.u32 %s345, 4
          %s354 = int_to_ptr.vmem [resolvable:$true] %s353
          %359 = dma.hbm_to_vmem [thread:$0]  %s352, 1024, %s354, %s342, 64, 64, 4
        $region28: #{tpu_custom_call.1} parent=19 // pred_fallthru
          _
        // Predicated region
        $region29: #{tpu_custom_call.1} parent=19 // pred_check
          %p360 = pneg %p114
        $region30: #{tpu_custom_call.1} parent=19 // pred_check_branch
          %362 = sbr.rel (%p360) target = $region32
        $region31: #{tpu_custom_call.1} parent=19 // pred_region
          %s363 = sand.u32 %s30, 1
          %s364 = scalar_lea.sflag [#allocation6], %s363
          %s365 = sand.u32 %s104, 1
          %s366 = smul.addr %s365, 64
          %s367 = scalar_lea.vmem [#allocation7], %s366
          %369 = vsyncadd %s364, 0
          %s370 = smul.addr %s38, 16
          %s371 = smul.addr %s370, 4
          %s372 = scalar_lea.hbm %s2, %s371
          %s373 = sshll.u32 %s372, 4
          %s374 = int_to_ptr.hbm [resolvable:$true] %s373
          %s375 = sshll.u32 %s367, 4
          %s376 = int_to_ptr.vmem [resolvable:$true] %s375
          %381 = dma.hbm_to_vmem [thread:$0]  %s374, 1024, %s376, %s364, 64, 64, 4
        $region32: #{tpu_custom_call.1} parent=19 // pred_fallthru
          _
        // Predicated region
        $region33: #{tpu_custom_call.1} parent=19 // pred_check
          %p382 = pneg %p140
        $region34: #{tpu_custom_call.1} parent=19 // pred_check_branch
          %384 = sbr.rel (%p382) target = $region36
        $region35: #{tpu_custom_call.1} parent=19 // pred_region
          %s385 = sand.u32 %s30, 1
          %s386 = scalar_lea.sflag [#allocation9], %s385
          %s387 = sand.u32 %s130, 1
          %s388 = smul.addr %s387, 64
          %s389 = scalar_lea.vmem [#allocation8], %s388
          %391 = vsyncadd %s386, 0
          %s392 = smul.addr %s38, 16
          %s393 = smul.addr %s392, 4
          %s394 = scalar_lea.hbm %s3, %s393
          %s395 = sshll.u32 %s394, 4
          %s396 = int_to_ptr.hbm [resolvable:$true] %s395
          %s397 = sshll.u32 %s389, 4
          %s398 = int_to_ptr.vmem [resolvable:$true] %s397
          %403 = dma.hbm_to_vmem [thread:$0]  %s396, 1024, %s398, %s386, 64, 64, 4
        $region36: #{tpu_custom_call.1} parent=19 // pred_fallthru
          _
        // Predicated region
        $region37: #{tpu_custom_call.1} parent=19 // pred_check
          %p404 = pneg %p166
        $region38: #{tpu_custom_call.1} parent=19 // pred_check_branch
          %406 = sbr.rel (%p404) target = $region40
        $region39: #{tpu_custom_call.1} parent=19 // pred_region
          %s407 = sand.u32 %s30, 1
          %s408 = scalar_lea.sflag [#allocation9], %s407
          %s409 = sand.u32 %s156, 1
          %s410 = scalar_lea.vmem [#allocation10], %s409
          %412 = vsyncadd %s408, 0
          %s413 = scalar_lea.hbm %s4, %s38
          %s415 = sshll.u32 %s413, 4
          %s416 = int_to_ptr.hbm [resolvable:$true] %s415
          %s417 = sshll.u32 %s410, 4
          %s418 = int_to_ptr.vmem [resolvable:$true] %s417
          %420 = dma.hbm_to_vmem [thread:$0]  %s416, 16, %s418, %s408
        $region40: #{tpu_custom_call.1} parent=19 // pred_fallthru
          _
        // Predicated region
        $region41: #{tpu_custom_call.1} parent=19 // pred_check
          %p421 = pneg %p192
        $region42: #{tpu_custom_call.1} parent=19 // pred_check_branch
          %423 = sbr.rel (%p421) target = $region44
        $region43: #{tpu_custom_call.1} parent=19 // pred_region
          %p424 = scmp.lt.s32.totalorder %s38, 3
          %s425 = scalar_select %p424, %s38, 3
          %s426 = scalar_lea.vmem %s5, %s425
        $region44: #{tpu_custom_call.1} parent=19 // pred_fallthru
          _
        // Predicated region
        $region45: #{tpu_custom_call.1} parent=19 // pred_check
          %p427 = pneg %p218
        $region46: #{tpu_custom_call.1} parent=19 // pred_check_branch
          %429 = sbr.rel (%p427) target = $region48
        $region47: #{tpu_custom_call.1} parent=19 // pred_region
          %s430 = sand.u32 %s30, 1
          %s431 = scalar_lea.sflag [#allocation12], %s430
          %s432 = sand.u32 %s208, 1
          %s433 = scalar_lea.vmem [#allocation11], %s432
          %435 = vsyncadd %s431, 0
          %s436 = scalar_lea.hbm %s6, %s38
          %s438 = sshll.u32 %s436, 4
          %s439 = int_to_ptr.hbm [resolvable:$true] %s438
          %s440 = sshll.u32 %s433, 4
          %s441 = int_to_ptr.vmem [resolvable:$true] %s440
          %443 = dma.hbm_to_vmem [thread:$0]  %s439, 16, %s441, %s431
        $region48: #{tpu_custom_call.1} parent=19 // pred_fallthru
          _
        // Predicated region
        $region49: #{tpu_custom_call.1} parent=19 // pred_check
          %p444 = pneg %p244
        $region50: #{tpu_custom_call.1} parent=19 // pred_check_branch
          %446 = sbr.rel (%p444) target = $region52
        $region51: #{tpu_custom_call.1} parent=19 // pred_region
          %s447 = sand.u32 %s30, 1
          %s448 = scalar_lea.sflag [#allocation12], %s447
          %s449 = sand.u32 %s234, 1
          %s450 = smul.addr %s449, 64
          %s451 = scalar_lea.vmem [#allocation13], %s450
          %453 = vsyncadd %s448, 0
          %s454 = smul.addr %s38, 16
          %s455 = smul.addr %s454, 4
          %s456 = scalar_lea.hbm %s7, %s455
          %s457 = sshll.u32 %s456, 4
          %s458 = int_to_ptr.hbm [resolvable:$true] %s457
          %s459 = sshll.u32 %s451, 4
          %s460 = int_to_ptr.vmem [resolvable:$true] %s459
          %465 = dma.hbm_to_vmem [thread:$0]  %s458, 1024, %s460, %s448, 64, 64, 4
        $region52: #{tpu_custom_call.1} parent=19 // pred_fallthru
          _
      $region20: #{tpu_custom_call.1} parent=5 // pred_fallthru
        _
      %p466 = scmp.le.s32.totalorder 1, %s30
      %p467 = scmp.lt.s32.totalorder %s30, 9
      %p468 = pnand %p466, %p467
      %p469 = pneg %p468
      // Predicated region
      $region53: #{tpu_custom_call.1} parent=5 // pred_check
        _
      $region54: #{tpu_custom_call.1} parent=5 // pred_check_branch
        %471 = sbr.rel (%p468) target = $region56
      $region55: #{tpu_custom_call.1} parent=5 // pred_region
        %s472 = ssub.s32 %s30, 1
        %s473 = sand.u32 %s55, 1
        %s474 = scalar_lea.sflag [#allocation3], %s473
        %s475 = sand.u32 %s55, 1
        %s476 = smul.addr %s475, 8
        %s477 = scalar_lea.vmem [#allocation2], %s476
        // Predicated region
        $region57: #{tpu_custom_call.1} parent=55 // pred_check
          %p478 = pneg %p68
        $region58: #{tpu_custom_call.1} parent=55 // pred_check_branch
          %480 = sbr.rel (%p478) target = $region60
        $region59: #{tpu_custom_call.1} parent=55 // pred_region
          %482 = dma.done %s474, 128
        $region60: #{tpu_custom_call.1} parent=55 // pred_fallthru
          _
        %s483 = sand.u32 %s35, 1
        %s484 = scalar_lea.sflag [#allocation6], %s483
        %s485 = sand.u32 %s81, 1
        %s486 = smul.addr %s485, 64
        %s487 = scalar_lea.vmem [#allocation5], %s486
        // Predicated region
        $region61: #{tpu_custom_call.1} parent=55 // pred_check
          %p488 = pneg %p94
        $region62: #{tpu_custom_call.1} parent=55 // pred_check_branch
          %490 = sbr.rel (%p488) target = $region64
        $region63: #{tpu_custom_call.1} parent=55 // pred_region
          %492 = dma.done %s484, 1024
        $region64: #{tpu_custom_call.1} parent=55 // pred_fallthru
          _
        %s493 = sand.u32 %s35, 1
        %s494 = scalar_lea.sflag [#allocation6], %s493
        %s495 = sand.u32 %s107, 1
        %s496 = smul.addr %s495, 64
        %s497 = scalar_lea.vmem [#allocation7], %s496
        // Predicated region
        $region65: #{tpu_custom_call.1} parent=55 // pred_check
          %p498 = pneg %p120
        $region66: #{tpu_custom_call.1} parent=55 // pred_check_branch
          %500 = sbr.rel (%p498) target = $region68
        $region67: #{tpu_custom_call.1} parent=55 // pred_region
          %502 = dma.done %s494, 1024
        $region68: #{tpu_custom_call.1} parent=55 // pred_fallthru
          _
        %s503 = sand.u32 %s35, 1
        %s504 = scalar_lea.sflag [#allocation9], %s503
        %s505 = sand.u32 %s133, 1
        %s506 = smul.addr %s505, 64
        %s507 = scalar_lea.vmem [#allocation8], %s506
        // Predicated region
        $region69: #{tpu_custom_call.1} parent=55 // pred_check
          %p508 = pneg %p146
        $region70: #{tpu_custom_call.1} parent=55 // pred_check_branch
          %510 = sbr.rel (%p508) target = $region72
        $region71: #{tpu_custom_call.1} parent=55 // pred_region
          %512 = dma.done %s504, 1024
        $region72: #{tpu_custom_call.1} parent=55 // pred_fallthru
          _
        %s513 = sand.u32 %s35, 1
        %s514 = scalar_lea.sflag [#allocation9], %s513
        %s515 = sand.u32 %s159, 1
        %s516 = scalar_lea.vmem [#allocation10], %s515
        // Predicated region
        $region73: #{tpu_custom_call.1} parent=55 // pred_check
          %p517 = pneg %p172
        $region74: #{tpu_custom_call.1} parent=55 // pred_check_branch
          %519 = sbr.rel (%p517) target = $region76
        $region75: #{tpu_custom_call.1} parent=55 // pred_region
          %521 = dma.done %s514, 16
        $region76: #{tpu_custom_call.1} parent=55 // pred_fallthru
          _
        %s522 = sand.u32 %s35, 1
        %s523 = scalar_lea.sflag [#allocation12], %s522
        %s524 = sand.u32 %s211, 1
        %s525 = scalar_lea.vmem [#allocation11], %s524
        // Predicated region
        $region77: #{tpu_custom_call.1} parent=55 // pred_check
          %p526 = pneg %p224
        $region78: #{tpu_custom_call.1} parent=55 // pred_check_branch
          %528 = sbr.rel (%p526) target = $region80
        $region79: #{tpu_custom_call.1} parent=55 // pred_region
          %530 = dma.done %s523, 16
        $region80: #{tpu_custom_call.1} parent=55 // pred_fallthru
          _
        %s531 = sand.u32 %s35, 1
        %s532 = scalar_lea.sflag [#allocation12], %s531
        %s533 = sand.u32 %s237, 1
        %s534 = smul.addr %s533, 64
        %s535 = scalar_lea.vmem [#allocation13], %s534
        // Predicated region
        $region81: #{tpu_custom_call.1} parent=55 // pred_check
          %p536 = pneg %p250
        $region82: #{tpu_custom_call.1} parent=55 // pred_check_branch
          %538 = sbr.rel (%p536) target = $region84
        $region83: #{tpu_custom_call.1} parent=55 // pred_region
          %540 = dma.done %s532, 1024
        $region84: #{tpu_custom_call.1} parent=55 // pred_fallthru
          _
        %s541 = sand.u32 %s55, 1
        %s542 = scalar_lea.sflag [#allocation3], %s541
        %s543 = sand.u32 %s55, 1
        %s544 = smul.addr %s543, 8
        %s545 = scalar_lea.vmem [#allocation2], %s544
        %p546 = pneg %p68
        %p547 = pneg %p65
        %s548 = sand.u32 %s35, 1
        %s549 = scalar_lea.sflag [#allocation6], %s548
        %s550 = sand.u32 %s81, 1
        %s551 = smul.addr %s550, 64
        %s552 = scalar_lea.vmem [#allocation5], %s551
        %p553 = pneg %p94
        %p554 = pneg %p91
        %s555 = sand.u32 %s35, 1
        %s556 = scalar_lea.sflag [#allocation6], %s555
        %s557 = sand.u32 %s107, 1
        %s558 = smul.addr %s557, 64
        %s559 = scalar_lea.vmem [#allocation7], %s558
        %p560 = pneg %p120
        %p561 = pneg %p117
        %s562 = sand.u32 %s35, 1
        %s563 = scalar_lea.sflag [#allocation9], %s562
        %s564 = sand.u32 %s133, 1
        %s565 = smul.addr %s564, 64
        %s566 = scalar_lea.vmem [#allocation8], %s565
        %p567 = pneg %p146
        %p568 = pneg %p143
        %s569 = sand.u32 %s35, 1
        %s570 = scalar_lea.sflag [#allocation9], %s569
        %s571 = sand.u32 %s159, 1
        %s572 = scalar_lea.vmem [#allocation10], %s571
        %p573 = pneg %p172
        %p574 = pneg %p169
        %p575 = scmp.lt.s32.totalorder %s40, 3
        %s576 = scalar_select %p575, %s40, 3
        %s577 = scalar_lea.vmem %s5, %s576
        %p578 = pneg %p198
        %p579 = pneg %p195
        %s580 = sand.u32 %s35, 1
        %s581 = scalar_lea.sflag [#allocation12], %s580
        %s582 = sand.u32 %s211, 1
        %s583 = scalar_lea.vmem [#allocation11], %s582
        %p584 = pneg %p224
        %p585 = pneg %p221
        %s586 = sand.u32 %s35, 1
        %s587 = scalar_lea.sflag [#allocation12], %s586
        %s588 = sand.u32 %s237, 1
        %s589 = smul.addr %s588, 64
        %s590 = scalar_lea.vmem [#allocation13], %s589
        %p591 = pneg %p250
        %p592 = pneg %p247
        %p593 = pneg %p271
        %p594 = pneg %p268
        %p595 = pneg %p297
        %p596 = pneg %p294
        %s597 = sand.u32 %s284, 1
        %s598 = scalar_lea.sflag [#allocation4], %s597
        %s599 = sand.u32 %s284, 1
        %s600 = smul.addr %s599, 8
        %s601 = scalar_lea.vmem [#allocation14], %s600
        %p602 = scmp.lt.s32.totalorder %s40, 3
        %s603 = scalar_select %p602, %s40, 3
        %s604 = scalar_lea.vmem %s5, %s603
        %v606 = vld [vmem:[%s477] sm:$0xff]
        %v607 = vpack.c.bf16 %v606, %v606
        %v608 = vld [vmem:[%s487] sm:$0xf]
        %v609 = vld [vmem:[%s487 + $0x4] sm:$0xf]
        %v610 = vld [vmem:[%s487 + $0x8] sm:$0xf]
        %v611 = vld [vmem:[%s487 + $0xc] sm:$0xf]
        %v612 = vld [vmem:[%s487 + $0x10] sm:$0xf]
        %v613 = vld [vmem:[%s487 + $0x14] sm:$0xf]
        %v614 = vld [vmem:[%s487 + $0x18] sm:$0xf]
        %v615 = vld [vmem:[%s487 + $0x1c] sm:$0xf]
        %v616 = vld [vmem:[%s487 + $0x20] sm:$0xf]
        %v617 = vld [vmem:[%s487 + $0x24] sm:$0xf]
        %v618 = vld [vmem:[%s487 + $0x28] sm:$0xf]
        %v619 = vld [vmem:[%s487 + $0x2c] sm:$0xf]
        %v620 = vld [vmem:[%s487 + $0x30] sm:$0xf]
        %v621 = vld [vmem:[%s487 + $0x34] sm:$0xf]
        %v622 = vld [vmem:[%s487 + $0x38] sm:$0xf]
        %v623 = vld [vmem:[%s487 + $0x3c] sm:$0xf]
        %v624 = vld [vmem:[%s516] sm:$0x1]
        %v626 = vperm.slane %v624, 0
        %v644 = vunpack.c.l.b16 %v608
        %v645 = vunpack.c.l.b16 %v609
        %v646 = vunpack.c.l.b16 %v610
        %v647 = vunpack.c.l.b16 %v611
        %v648 = vunpack.c.l.b16 %v612
        %v649 = vunpack.c.l.b16 %v613
        %v650 = vunpack.c.l.b16 %v614
        %v651 = vunpack.c.l.b16 %v615
        %v652 = vunpack.c.l.b16 %v616
        %v653 = vunpack.c.l.b16 %v617
        %v654 = vunpack.c.l.b16 %v618
        %v655 = vunpack.c.l.b16 %v619
        %v656 = vunpack.c.l.b16 %v620
        %v657 = vunpack.c.l.b16 %v621
        %v658 = vunpack.c.l.b16 %v622
        %v659 = vunpack.c.l.b16 %v623
        %v660 = vpack.c.b16 %v645, %v644
        %v661 = vpack.c.b16 %v647, %v646
        %v662 = vpack.c.b16 %v649, %v648
        %v663 = vpack.c.b16 %v651, %v650
        %v664 = vpack.c.b16 %v653, %v652
        %v665 = vpack.c.b16 %v655, %v654
        %v666 = vpack.c.b16 %v657, %v656
        %v667 = vpack.c.b16 %v659, %v658
        %676 = vmatpush.bf16.msra.mxu0 %v667
        %677 = vmatpush.bf16.msra.mxu0 %v666
        %678 = vmatpush.bf16.msra.mxu0 %v665
        %679 = vmatpush.bf16.msra.mxu0 %v664
        %680 = vmatpush.bf16.msra.mxu0 %v663
        %681 = vmatpush.bf16.msra.mxu0 %v662
        %682 = vmatpush.bf16.msra.mxu0 %v661
        %683 = vmatpush.bf16.msra.mxu0 %v660
        %684 = vmatmul.bf16.gmra.mxu0 %v607
        %v685 = vpop.f32.mrf.mxu0
        %v686 = vadd.f32 %v626, %v685
        %v687 = vpop.f32.mrf.mxu0
        %688 = vdwg.mxu0
        %v689 = vld [vmem:[%s497] sm:$0xf]
        %v690 = vld [vmem:[%s497 + $0x4] sm:$0xf]
        %v691 = vld [vmem:[%s497 + $0x8] sm:$0xf]
        %v692 = vld [vmem:[%s497 + $0xc] sm:$0xf]
        %v693 = vld [vmem:[%s497 + $0x10] sm:$0xf]
        %v694 = vld [vmem:[%s497 + $0x14] sm:$0xf]
        %v695 = vld [vmem:[%s497 + $0x18] sm:$0xf]
        %v696 = vld [vmem:[%s497 + $0x1c] sm:$0xf]
        %v697 = vld [vmem:[%s497 + $0x20] sm:$0xf]
        %v698 = vld [vmem:[%s497 + $0x24] sm:$0xf]
        %v699 = vld [vmem:[%s497 + $0x28] sm:$0xf]
        %v700 = vld [vmem:[%s497 + $0x2c] sm:$0xf]
        %v701 = vld [vmem:[%s497 + $0x30] sm:$0xf]
        %v702 = vld [vmem:[%s497 + $0x34] sm:$0xf]
        %v703 = vld [vmem:[%s497 + $0x38] sm:$0xf]
        %v704 = vld [vmem:[%s497 + $0x3c] sm:$0xf]
        %v705 = vld [vmem:[%s604] sm:$0x1]
        %v707 = vperm.slane %v705, 0
        %v725 = vunpack.c.l.b16 %v689
        %v726 = vunpack.c.l.b16 %v690
        %v727 = vunpack.c.l.b16 %v691
        %v728 = vunpack.c.l.b16 %v692
        %v729 = vunpack.c.l.b16 %v693
        %v730 = vunpack.c.l.b16 %v694
        %v731 = vunpack.c.l.b16 %v695
        %v732 = vunpack.c.l.b16 %v696
        %v733 = vunpack.c.l.b16 %v697
        %v734 = vunpack.c.l.b16 %v698
        %v735 = vunpack.c.l.b16 %v699
        %v736 = vunpack.c.l.b16 %v700
        %v737 = vunpack.c.l.b16 %v701
        %v738 = vunpack.c.l.b16 %v702
        %v739 = vunpack.c.l.b16 %v703
        %v740 = vunpack.c.l.b16 %v704
        %v741 = vpack.c.b16 %v726, %v725
        %v742 = vpack.c.b16 %v728, %v727
        %v743 = vpack.c.b16 %v730, %v729
        %v744 = vpack.c.b16 %v732, %v731
        %v745 = vpack.c.b16 %v734, %v733
        %v746 = vpack.c.b16 %v736, %v735
        %v747 = vpack.c.b16 %v738, %v737
        %v748 = vpack.c.b16 %v740, %v739
        %757 = vmatpush.bf16.msra.mxu0 %v748
        %758 = vmatpush.bf16.msra.mxu0 %v747
        %759 = vmatpush.bf16.msra.mxu0 %v746
        %760 = vmatpush.bf16.msra.mxu0 %v745
        %761 = vmatpush.bf16.msra.mxu0 %v744
        %762 = vmatpush.bf16.msra.mxu0 %v743
        %763 = vmatpush.bf16.msra.mxu0 %v742
        %764 = vmatpush.bf16.msra.mxu0 %v741
        %765 = vmatmul.bf16.gmra.mxu0 %v607
        %v766 = vpop.f32.mrf.mxu0
        %v767 = vadd.f32 %v707, %v766
        %v768 = vpop.f32.mrf.mxu0
        %769 = vdwg.mxu0
        %v770 = vld [vmem:[%s507] sm:$0xf]
        %v771 = vld [vmem:[%s507 + $0x4] sm:$0xf]
        %v772 = vld [vmem:[%s507 + $0x8] sm:$0xf]
        %v773 = vld [vmem:[%s507 + $0xc] sm:$0xf]
        %v774 = vld [vmem:[%s507 + $0x10] sm:$0xf]
        %v775 = vld [vmem:[%s507 + $0x14] sm:$0xf]
        %v776 = vld [vmem:[%s507 + $0x18] sm:$0xf]
        %v777 = vld [vmem:[%s507 + $0x1c] sm:$0xf]
        %v778 = vld [vmem:[%s507 + $0x20] sm:$0xf]
        %v779 = vld [vmem:[%s507 + $0x24] sm:$0xf]
        %v780 = vld [vmem:[%s507 + $0x28] sm:$0xf]
        %v781 = vld [vmem:[%s507 + $0x2c] sm:$0xf]
        %v782 = vld [vmem:[%s507 + $0x30] sm:$0xf]
        %v783 = vld [vmem:[%s507 + $0x34] sm:$0xf]
        %v784 = vld [vmem:[%s507 + $0x38] sm:$0xf]
        %v785 = vld [vmem:[%s507 + $0x3c] sm:$0xf]
        %v786 = vld [vmem:[%s525] sm:$0x1]
        %v788 = vperm.slane %v786, 0
        %v806 = vunpack.c.l.b16 %v770
        %v807 = vunpack.c.l.b16 %v771
        %v808 = vunpack.c.l.b16 %v772
        %v809 = vunpack.c.l.b16 %v773
        %v810 = vunpack.c.l.b16 %v774
        %v811 = vunpack.c.l.b16 %v775
        %v812 = vunpack.c.l.b16 %v776
        %v813 = vunpack.c.l.b16 %v777
        %v814 = vunpack.c.l.b16 %v778
        %v815 = vunpack.c.l.b16 %v779
        %v816 = vunpack.c.l.b16 %v780
        %v817 = vunpack.c.l.b16 %v781
        %v818 = vunpack.c.l.b16 %v782
        %v819 = vunpack.c.l.b16 %v783
        %v820 = vunpack.c.l.b16 %v784
        %v821 = vunpack.c.l.b16 %v785
        %v822 = vpack.c.b16 %v807, %v806
        %v823 = vpack.c.b16 %v809, %v808
        %v824 = vpack.c.b16 %v811, %v810
        %v825 = vpack.c.b16 %v813, %v812
        %v826 = vpack.c.b16 %v815, %v814
        %v827 = vpack.c.b16 %v817, %v816
        %v828 = vpack.c.b16 %v819, %v818
        %v829 = vpack.c.b16 %v821, %v820
        %838 = vmatpush.bf16.msra.mxu0 %v829
        %839 = vmatpush.bf16.msra.mxu0 %v828
        %840 = vmatpush.bf16.msra.mxu0 %v827
        %841 = vmatpush.bf16.msra.mxu0 %v826
        %842 = vmatpush.bf16.msra.mxu0 %v825
        %843 = vmatpush.bf16.msra.mxu0 %v824
        %844 = vmatpush.bf16.msra.mxu0 %v823
        %845 = vmatpush.bf16.msra.mxu0 %v822
        %846 = vmatmul.bf16.gmra.mxu0 %v607
        %v847 = vpop.f32.mrf.mxu0
        %v848 = vadd.f32 %v788, %v847
        %v849 = vpop.f32.mrf.mxu0
        %850 = vdwg.mxu0
        %v851 = vpack.c.bf16 %v686, %v686
        %v852 = vpack.c.bf16 %v767, %v767
        %v853 = vpack.c.bf16 %v848, %v848
        %854 = vmatpush.bf16.xpose.msra.mxu0 0
        %855 = vmatpush.bf16.xpose.msra.mxu0 0
        %856 = vmatpush.bf16.xpose.msra.mxu0 0
        %857 = vmatpush.bf16.xpose.msra.mxu0 0
        %858 = vmatpush.bf16.xpose.msra.mxu0 0
        %859 = vmatpush.bf16.xpose.msra.mxu0 0
        %860 = vmatpush.bf16.xpose.msra.mxu0 0
        %861 = vmatpush.bf16.xpose.msra.mxu0 %v852
        %862 = vmatmul.bf16.gmra.mxu0 %v851
        %v863 = vpop.f32.mrf.mxu0
        %v864 = vadd.f32 0.0, %v863
        %v865 = vpop.f32.mrf.mxu0
        %866 = vdwg.mxu0
        %vm867 = vcmask 64512
        %v868 = vsel %vm867, %v864, -inf
        %869 = vmax.xlane.f32.xlu0 %v868
        %v870 = vpop.xlane.xlu0 %869
        %v871 = vsub.f32 %v864, %v870
        %v872 = vmul.f32 %v871, 1.442695
        %v873 = vpow.pop %v872
        %v874 = vsel %vm867, %v873, 0.0
        %875 = vadd.xlane.f32.xlu0 %v874
        %v876 = vpop.xlane.xlu0 %875
        %v877 = vpack.c.bf16 %v873, %v873
        %v879 = vsel %vm867, %v877, 0
        %vm881 = vcmask 1043456
        %v883 = vsel %vm881, %v853, 0
        %885 = vmatpush.bf16.msra.mxu0 0
        %886 = vmatpush.bf16.msra.mxu0 0
        %887 = vmatpush.bf16.msra.mxu0 0
        %888 = vmatpush.bf16.msra.mxu0 0
        %889 = vmatpush.bf16.msra.mxu0 0
        %890 = vmatpush.bf16.msra.mxu0 0
        %891 = vmatpush.bf16.msra.mxu0 0
        %892 = vmatpush.bf16.msra.mxu0 %v883
        %893 = vmatmul.bf16.gmra.mxu0 %v879
        %v894 = vpop.f32.mrf.mxu0
        %v895 = vadd.f32 0.0, %v894
        %v896 = vpop.f32.mrf.mxu0
        %897 = vdwg.mxu0
        %v898 = vrcp.pop %v876
        %v899 = vmul.f32 %v895, %v898
        %v900 = vpack.c.bf16 %v899, %v899
        %v901 = vld [vmem:[%s535] sm:$0xf]
        %v902 = vld [vmem:[%s535 + $0x4] sm:$0xf]
        %v903 = vld [vmem:[%s535 + $0x8] sm:$0xf]
        %v904 = vld [vmem:[%s535 + $0xc] sm:$0xf]
        %v905 = vld [vmem:[%s535 + $0x10] sm:$0xf]
        %v906 = vld [vmem:[%s535 + $0x14] sm:$0xf]
        %v907 = vld [vmem:[%s535 + $0x18] sm:$0xf]
        %v908 = vld [vmem:[%s535 + $0x1c] sm:$0xf]
        %v909 = vld [vmem:[%s535 + $0x20] sm:$0xf]
        %v910 = vld [vmem:[%s535 + $0x24] sm:$0xf]
        %v911 = vld [vmem:[%s535 + $0x28] sm:$0xf]
        %v912 = vld [vmem:[%s535 + $0x2c] sm:$0xf]
        %v913 = vld [vmem:[%s535 + $0x30] sm:$0xf]
        %v914 = vld [vmem:[%s535 + $0x34] sm:$0xf]
        %v915 = vld [vmem:[%s535 + $0x38] sm:$0xf]
        %v916 = vld [vmem:[%s535 + $0x3c] sm:$0xf]
        %v933 = vunpack.c.l.b16 %v901
        %v934 = vunpack.c.l.b16 %v902
        %v935 = vunpack.c.l.b16 %v903
        %v936 = vunpack.c.l.b16 %v904
        %v937 = vunpack.c.l.b16 %v905
        %v938 = vunpack.c.l.b16 %v906
        %v939 = vunpack.c.l.b16 %v907
        %v940 = vunpack.c.l.b16 %v908
        %v941 = vunpack.c.l.b16 %v909
        %v942 = vunpack.c.l.b16 %v910
        %v943 = vunpack.c.l.b16 %v911
        %v944 = vunpack.c.l.b16 %v912
        %v945 = vunpack.c.l.b16 %v913
        %v946 = vunpack.c.l.b16 %v914
        %v947 = vunpack.c.l.b16 %v915
        %v948 = vunpack.c.l.b16 %v916
        %v949 = vpack.c.b16 %v934, %v933
        %v950 = vpack.c.b16 %v936, %v935
        %v951 = vpack.c.b16 %v938, %v937
        %v952 = vpack.c.b16 %v940, %v939
        %v953 = vpack.c.b16 %v942, %v941
        %v954 = vpack.c.b16 %v944, %v943
        %v955 = vpack.c.b16 %v946, %v945
        %v956 = vpack.c.b16 %v948, %v947
        %965 = vmatpush.bf16.msra.mxu0 %v956
        %966 = vmatpush.bf16.msra.mxu0 %v955
        %967 = vmatpush.bf16.msra.mxu0 %v954
        %968 = vmatpush.bf16.msra.mxu0 %v953
        %969 = vmatpush.bf16.msra.mxu0 %v952
        %970 = vmatpush.bf16.msra.mxu0 %v951
        %971 = vmatpush.bf16.msra.mxu0 %v950
        %972 = vmatpush.bf16.msra.mxu0 %v949
        %973 = vmatmul.bf16.gmra.mxu0 %v900
        %v974 = vpop.f32.mrf.mxu0
        %v975 = vadd.f32 0.0, %v974
        %v976 = vpop.f32.mrf.mxu0
        %977 = vdwg.mxu0
        %p978 = scmp.eq.s32.totalorder %s40, 0
        // Predicated region
        $region85: #{tpu_custom_call.1} parent=55 // pred_check
          %p979 = pneg %p978
        $region86: #{tpu_custom_call.1} parent=55 // pred_check_branch
          %981 = sbr.rel (%p979) target = $region88
        $region87: #{tpu_custom_call.1} parent=55 // pred_region
          %v982 = vld [vmem:[%s8] sm:$0x1]
          %v984 = vperm.slane %v982, 0
          %986 = vst [vmem:[%s601] sm:$0xff] %v984
        $region88: #{tpu_custom_call.1} parent=55 // pred_fallthru
          _
        %v987 = vld [vmem:[%s601] sm:$0xff]
        %v988 = vadd.f32 %v987, %v975
        %989 = vst [vmem:[%s601] sm:$0xff] %v988
        %s990 = sand.u32 %s284, 1
        %s991 = scalar_lea.sflag [#allocation4], %s990
        %s992 = sand.u32 %s284, 1
        %s993 = smul.addr %s992, 8
        %s994 = scalar_lea.vmem [#allocation14], %s993
        // Predicated region
        $region89: #{tpu_custom_call.1} parent=55 // pred_check
          %p995 = pneg %p294
        $region90: #{tpu_custom_call.1} parent=55 // pred_check_branch
          %997 = sbr.rel (%p995) target = $region92
        $region91: #{tpu_custom_call.1} parent=55 // pred_region
          %999 = vsyncadd %s991, 0
          %s1000 = smul.addr %s39, 8
          %s1001 = scalar_lea.hbm %s9, %s1000
          %s1003 = sshll.u32 %s994, 4
          %s1004 = int_to_ptr.vmem [resolvable:$true] %s1003
          %s1005 = sshll.u32 %s1001, 4
          %s1006 = int_to_ptr.hbm [resolvable:$true] %s1005
          %1008 = dma.vmem_to_hbm [thread:$0]  %s1004, 128, %s1006, %s991
        $region92: #{tpu_custom_call.1} parent=55 // pred_fallthru
          _
      $region56: #{tpu_custom_call.1} parent=5 // pred_fallthru
        _
      %p1009 = scmp.le.s32.totalorder 2, %s30
      // Predicated region
      $region93: #{tpu_custom_call.1} parent=5 // pred_check
        %p1010 = pneg %p1009
      $region94: #{tpu_custom_call.1} parent=5 // pred_check_branch
        %1012 = sbr.rel (%p1010) target = $region96
      $region95: #{tpu_custom_call.1} parent=5 // pred_region
        %s1013 = ssub.s32 %s30, 2
        // Predicated region
        $region97: #{tpu_custom_call.1} parent=95 // pred_check
          %p1014 = pneg %p300
        $region98: #{tpu_custom_call.1} parent=95 // pred_check_branch
          %1016 = sbr.rel (%p1014) target = $region100
        $region99: #{tpu_custom_call.1} parent=95 // pred_region
          %s1017 = sand.u32 %s285, 1
          %s1018 = scalar_lea.sflag [#allocation4], %s1017
          %s1019 = sand.u32 %s285, 1
          %s1020 = smul.addr %s1019, 8
          %s1021 = scalar_lea.vmem [#allocation14], %s1020
          %1023 = dma.done %s1018, 128
        $region100: #{tpu_custom_call.1} parent=95 // pred_fallthru
          _
      $region96: #{tpu_custom_call.1} parent=5 // pred_fallthru
        _
    $region6: #{tpu_custom_call.1} parent=1 // loop_footer
      %s34 = sadd.s32 1, %s30
    $region7: #{tpu_custom_call.1} parent=1 // loop_footer_branch
      %29 = sbr.rel target = $region3
    $region8: #{tpu_custom_call.1} parent=1 // loop_exit
      _
    %1024 = vsyncpa [#allocation3], 1
    %s1025 = scalar_lea.sflag [#allocation3], 1
    %1026 = vsyncpa %s1025, 1
    %1027 = vsyncpa [#allocation6], 1
    %s1028 = scalar_lea.sflag [#allocation6], 1
    %1029 = vsyncpa %s1028, 1
    %1030 = vsyncpa [#allocation9], 1
    %s1031 = scalar_lea.sflag [#allocation9], 1
    %1032 = vsyncpa %s1031, 1
    %1033 = vsyncpa [#allocation12], 1
    %s1034 = scalar_lea.sflag [#allocation12], 1
    %1035 = vsyncpa %s1034, 1
    %1036 = vsyncpa [#allocation4], 1
    %s1037 = scalar_lea.sflag [#allocation4], 1
    %1038 = vsyncpa %s1037, 1

</llo_original>
